<compile_context>
chip_gen: v5e
topology: v5e:2x2
jax: 0.10.0
libtpu: 0.0.40
codegen_flags: <defaults>
</compile_context>

<pallas_src>
import jax
import jax.numpy as jnp
from jax.experimental import pallas as pl
from jax.experimental.pallas import tpu as pltpu


_TILE_BYTES = 2 << 20      # ~2 MiB per tile: ~85% of HBM roofline, VMEM-safe on all gens
_ROW_BYTES_MAX = 32 << 10  # use full-row tiles when one row is <= 32 KiB
_WIDE_TC = 4096            # lane tile (multiple of 128) for the very-wide-C fallback


def _round_up(v, m):
    return ((v + m - 1) // m) * m


def _add_bias_kernel(x_ref, b_ref, o_ref):
    # x_ref: (TM, TC) tile, b_ref: (1, TC) bias row -> broadcast add on the VPU.
    # Cast to the promoted output dtype in-registers (matches torch promotion).
    o_ref[...] = x_ref[...].astype(o_ref.dtype) + b_ref[...].astype(o_ref.dtype)


def add_bias(x, bias):
    """x: (N, C), bias: (C,) -> (N, C), matching AddBias.forward."""
    n, c = x.shape
    out_dtype = jnp.result_type(x.dtype, bias.dtype)
    # == bias.unsqueeze(1).t().view(1, -1); kept in its own dtype, promoted in-kernel.
    bias_row = bias.reshape(1, c)

    itemsize = x.dtype.itemsize
    # Minimum legal sublane block for this dtype: 8 (f32), 16 (bf16), 32 (int8).
    sublane = max(8, 32 // itemsize)
    row_bytes = c * itemsize

    if row_bytes <= _ROW_BYTES_MAX:
        # ---- Full-row tiles, 1-D grid over rows (contiguous DMAs). ----
        tc = c
        tm = max(sublane, (_TILE_BYTES // row_bytes) // sublane * sublane)
        if n > sublane:
            # Guarantee >= 2 row blocks so v7x megacore shards the grid.
            tm = min(tm, _round_up(pl.cdiv(n, 2), sublane))
        tm = min(tm, _round_up(n, sublane))
        if tm >= n:
            tm = n  # single block: block == full dim is always legal
        grid = (pl.cdiv(n, tm),)
        in_specs = [
            pl.BlockSpec((tm, tc), lambda i: (i, 0)),
            # Constant block index -> bias row fetched once, VMEM-resident.
            pl.BlockSpec((1, tc), lambda i: (0, 0)),
        ]
        out_specs = pl.BlockSpec((tm, tc), lambda i: (i, 0))
        dims = ("parallel",)
    else:
        # ---- Very wide C: 2-D grid, ROW axis innermost so the bias tile
        # stays resident across the inner loop. ----
        tc = min(c, _WIDE_TC)
        tm = max(sublane, (_TILE_BYTES // (tc * itemsize)) // sublane * sublane)
        tm = min(tm, _round_up(n, sublane))
        if tm >= n:
            tm = n
        grid = (pl.cdiv(c, tc), pl.cdiv(n, tm))  # (col, row): row iterates fastest
        in_specs = [
            pl.BlockSpec((tm, tc), lambda j, i: (i, j)),
            # Bias block index depends only on the outer (column) axis.
            pl.BlockSpec((1, tc), lambda j, i: (0, j)),
        ]
        out_specs = pl.BlockSpec((tm, tc), lambda j, i: (i, j))
        dims = ("parallel", "parallel")

    return pl.pallas_call(
        _add_bias_kernel,
        out_shape=jax.ShapeDtypeStruct((n, c), out_dtype),
        grid_spec=pl.GridSpec(grid=grid, in_specs=in_specs, out_specs=out_specs),
        compiler_params=pltpu.CompilerParams(dimension_semantics=dims),
    )(x, bias_row)


if __name__ == "__main__":
    key = jax.random.PRNGKey(0)
    kx, kb, kx2, kb2, kx3, kb3 = jax.random.split(key, 6)

    # Small demo shape consistent with the module (batch=8, hidden=32).
    N, C = 8, 32
    x = jax.random.normal(kx, (N, C), dtype=jnp.float32)
    bias = jax.random.normal(kb, (C,), dtype=jnp.float32)

    out = jax.block_until_ready(add_bias(x, bias))
    ref = x + bias.reshape(1, C)
    assert out.shape == (N, C) and out.dtype == ref.dtype
    assert jnp.allclose(out, ref, atol=1e-6), "mismatch vs reference (small)"

    # Exercise the full-row pipelined path: 1-D grid of 4 row blocks.
    N2, C2 = 1024, 2048
    x2 = jax.random.normal(kx2, (N2, C2), dtype=jnp.float32)
    bias2 = jax.random.normal(kb2, (C2,), dtype=jnp.float32)

    out2 = jax.block_until_ready(add_bias(x2, bias2))
    ref2 = x2 + bias2.reshape(1, C2)
    assert out2.shape == (N2, C2)
    assert jnp.allclose(out2, ref2, atol=1e-6), "mismatch vs reference (tiled rows)"

    # Exercise the very-wide-C fallback (2-D grid, row axis innermost).
    N3, C3 = 16, 16384
    x3 = jax.random.normal(kx3, (N3, C3), dtype=jnp.float32)
    bias3 = jax.random.normal(kb3, (C3,), dtype=jnp.float32)

    out3 = jax.block_until_ready(add_bias(x3, bias3))
    ref3 = x3 + bias3.reshape(1, C3)
    assert out3.shape == (N3, C3)
    assert jnp.allclose(out3, ref3, atol=1e-6), "mismatch vs reference (wide C)"

    print("KERNEL_OK")
</pallas_src>

<mosaic_0001>
module attributes {stable_mosaic.version = 11 : i64} {
  func.func @_add_bias_kernel(%arg0: i32, %arg1: memref<8x32xf32, #tpu.memory_space<vmem>>, %arg2: memref<1x32xf32, #tpu.memory_space<vmem>>, %arg3: memref<8x32xf32, #tpu.memory_space<vmem>>) attributes {dimension_semantics = [#tpu.dimension_semantics<parallel>], iteration_bounds = array<i64: 1>, scalar_prefetch = 0 : i64, scratch_operands = 0 : i64, tpu.core_type = #tpu.core_type<tc>, window_params = [{transform_indices = @transform_0, window_bounds = array<i64: 8, 32>}, {pipeline_mode = #tpu.pipeline_mode<synchronous>, transform_indices = @transform_1, window_bounds = array<i64: 1, 32>}, {transform_indices = @transform_2, window_bounds = array<i64: 8, 32>}]} {
    %c0 = arith.constant 0 : index
    %c0_0 = arith.constant 0 : index
    %0 = vector.load %arg1[%c0, %c0_0] : memref<8x32xf32, #tpu.memory_space<vmem>>, vector<8x32xf32>
    %c0_1 = arith.constant 0 : index
    %c0_2 = arith.constant 0 : index
    %1 = vector.load %arg2[%c0_1, %c0_2] : memref<1x32xf32, #tpu.memory_space<vmem>>, vector<1x32xf32>
    %2 = vector.broadcast %1 : vector<1x32xf32> to vector<8x32xf32>
    %3 = arith.addf %0, %2 : vector<8x32xf32>
    %c0_3 = arith.constant 0 : index
    %c0_4 = arith.constant 0 : index
    %4 = vector.load %arg3[%c0_3, %c0_4] : memref<8x32xf32, #tpu.memory_space<vmem>>, vector<8x32xf32>
    tpu.vector_store %arg3[%c0_3, %c0_4], %3 {strides = array<i32>} : memref<8x32xf32, #tpu.memory_space<vmem>>, vector<8x32xf32>,
    return
  }
  func.func @transform_0(%arg0: i32) -> (i32, i32) {
    %c0_i32 = arith.constant 0 : i32
    %c0_i32_0 = arith.constant 0 : i32
    return %arg0, %c0_i32 : i32, i32
  }
  func.func @transform_1(%arg0: i32) -> (i32, i32) {
    %c0_i32 = arith.constant 0 : i32
    %c0_i32_0 = arith.constant 0 : i32
    %c0_i32_1 = arith.constant 0 : i32
    return %c0_i32, %c0_i32_0 : i32, i32
  }
  func.func @transform_2(%arg0: i32) -> (i32, i32) {
    %c0_i32 = arith.constant 0 : i32
    %c0_i32_0 = arith.constant 0 : i32
    return %arg0, %c0_i32 : i32, i32
  }
}

</mosaic_0001>

<llo_original>
// kernel: tpu_custom_call.1
$region0: #{tpu_custom_call.1}
  #allocation0 [shape = 'u32[]', space=smem, size = 0x4, offset = 0x4, fixed_abs, tag = 'smem constant byte address 0x4 - core index']
  #allocation1 [shape = 'u32[72,128]{1,0:T(1,128)}', space=vmem, size = 0x9000, scoped, tag = 'internal scratch']
  %s0 = inlined_call_operand.hbm [shape: f32[8,32], index: 0, kind: input, shape index: {}]
  %s1 = inlined_call_operand.hbm [shape: f32[1,32], index: 1, kind: input, shape index: {}]
  %s2 = inlined_call_operand.hbm [shape: f32[8,32], index: 2, kind: output, shape index: {}]
  %s3 = sld [smem:[#allocation0]]
  $region26: #{tpu_custom_call.1} parent=0
    _
  %s5 = ssub.s32 1, %s3
  %s6 = scalar_select 0, %s5, %s3
  $region1: #{tpu_custom_call.1} parent=0
    #allocation2 [shape = 'u8[4096]{0}', space=vmem, size = 0x1000, scoped, tag = 'input window, operand 0, single buffered']
    #allocation3 [shape = 's32[1]{0}', space=sflag, size = 0x4, scoped, tag = 'scoped memory for tpu_custom_call.1']
    #allocation4 [shape = 's32[1]{0}', space=sflag, size = 0x4, scoped, tag = 'scoped memory for tpu_custom_call.1']
    #allocation5 [shape = 'u8[512]{0}', space=vmem, size = 0x400, scoped, tag = 'input window, operand 1, single buffered']
    #allocation6 [shape = 's32[1]{0}', space=sflag, size = 0x4, scoped, tag = 'scoped memory for tpu_custom_call.1']
    #allocation7 [shape = 'u8[4096]{0}', space=vmem, size = 0x1000, scoped, tag = 'output window, operand 0, single buffered']
    %7 = vsyncpa [#allocation3], 0
    %8 = vsyncpa [#allocation6], 0
    %9 = vsyncpa [#allocation4], 0
    // Predicated region
    $region2: #{tpu_custom_call.1} parent=1 // pred_check
      _
    $region3: #{tpu_custom_call.1} parent=1 // pred_check_branch
      %11 = sbr.rel (0) target = $region5
    $region4: #{tpu_custom_call.1} parent=1 // pred_region
      %13 = vsyncadd [#allocation3], 0
      %s15 = sshll.u32 %s0, 4
      %s16 = int_to_ptr.hbm [resolvable:$true] %s15
      %s17 = sshll.u32 [#allocation2], 4
      %s18 = int_to_ptr.vmem [resolvable:$true] %s17
      %20 = dma.hbm_to_vmem [thread:$0]  %s16, 128, %s18, [#allocation3]
    $region5: #{tpu_custom_call.1} parent=1 // pred_fallthru
      _
    // Predicated region
    $region6: #{tpu_custom_call.1} parent=1 // pred_check
      _
    $region7: #{tpu_custom_call.1} parent=1 // pred_check_branch
      %22 = sbr.rel (0) target = $region9
    $region8: #{tpu_custom_call.1} parent=1 // pred_region
      %24 = vsyncadd [#allocation6], 0
      %s26 = sshll.u32 %s1, 4
      %s27 = int_to_ptr.hbm [resolvable:$true] %s26
      %s28 = sshll.u32 [#allocation5], 4
      %s29 = int_to_ptr.vmem [resolvable:$true] %s28
      %31 = dma.hbm_to_vmem [thread:$0]  %s27, 16, %s29, [#allocation6]
    $region9: #{tpu_custom_call.1} parent=1 // pred_fallthru
      _
    // Predicated region
    $region10: #{tpu_custom_call.1} parent=1 // pred_check
      _
    $region11: #{tpu_custom_call.1} parent=1 // pred_check_branch
      %33 = sbr.rel (0) target = $region13
    $region12: #{tpu_custom_call.1} parent=1 // pred_region
      %35 = dma.done [#allocation3], 128
    $region13: #{tpu_custom_call.1} parent=1 // pred_fallthru
      _
    // Predicated region
    $region14: #{tpu_custom_call.1} parent=1 // pred_check
      _
    $region15: #{tpu_custom_call.1} parent=1 // pred_check_branch
      %37 = sbr.rel (0) target = $region17
    $region16: #{tpu_custom_call.1} parent=1 // pred_region
      %39 = dma.done [#allocation6], 16
    $region17: #{tpu_custom_call.1} parent=1 // pred_fallthru
      _
    %v40 = vld [vmem:[#allocation2] sm:$0xff]
    %v41 = vld [vmem:[#allocation5] sm:$0x1]
    %v43 = vperm.slane %v41, 0
    %v45 = vadd.f32 %v40, %v43
    %vm46 = vcmask 261120
    %47 = vst.msk [vmem:[#allocation7] sm:$0xff] %vm46, %v45
    // Predicated region
    $region18: #{tpu_custom_call.1} parent=1 // pred_check
      _
    $region19: #{tpu_custom_call.1} parent=1 // pred_check_branch
      %49 = sbr.rel (0) target = $region21
    $region20: #{tpu_custom_call.1} parent=1 // pred_region
      %51 = vsyncadd [#allocation4], 0
      %s53 = sshll.u32 [#allocation7], 4
      %s54 = int_to_ptr.vmem [resolvable:$true] %s53
      %s55 = sshll.u32 %s2, 4
      %s56 = int_to_ptr.hbm [resolvable:$true] %s55
      %58 = dma.vmem_to_hbm [thread:$0]  %s54, 128, %s56, [#allocation4]
    $region21: #{tpu_custom_call.1} parent=1 // pred_fallthru
      _
    // Predicated region
    $region22: #{tpu_custom_call.1} parent=1 // pred_check
      _
    $region23: #{tpu_custom_call.1} parent=1 // pred_check_branch
      %60 = sbr.rel (0) target = $region25
    $region24: #{tpu_custom_call.1} parent=1 // pred_region
      %62 = dma.done [#allocation4], 128
    $region25: #{tpu_custom_call.1} parent=1 // pred_fallthru
      _
    %63 = vsyncpa [#allocation3], 1
    %64 = vsyncpa [#allocation6], 1
    %65 = vsyncpa [#allocation4], 1

</llo_original>
